<compile_context>
chip_gen: v7x
topology: tpu7x:2x2x1
jax: 0.10.0
libtpu: 0.0.40
codegen_flags: <defaults>
</compile_context>

<pallas_src>
import functools

import jax
import jax.numpy as jnp
from jax.experimental import pallas as pl
from jax.experimental.pallas import tpu as pltpu


# -----------------------------------------------------------------------------
# Stage 1: [1 + scale], [shift] from the timestep embedding (tiny, one shot).
# -----------------------------------------------------------------------------
def _scale_shift_kernel(e_ref, w_ref, b_ref, scale1p_ref, shift_ref, *, dim):
    # e_ref: (1, D), w_ref: (D, 2D), b_ref: (1, 2D) f32
    # scale1p_ref / shift_ref: (1, D) f32
    e = e_ref[...].astype(jnp.float32)
    h = e * jax.nn.sigmoid(e)                                   # SiLU (EUP)
    y = jnp.dot(h, w_ref[...].astype(jnp.float32),
                preferred_element_type=jnp.float32)             # MXU, (1, 2D)
    y = y + b_ref[...]
    scale1p_ref[...] = y[:, :dim] + 1.0                         # fold "+1" once
    shift_ref[...] = y[:, dim:]


# -----------------------------------------------------------------------------
# Stage 2: row-wise LayerNorm (no affine) + modulation over (M, dim).
# -----------------------------------------------------------------------------
def _ada_ln_kernel(x_ref, scale1p_ref, shift_ref, o_ref, *, eps):
    # x_ref: (TM, D); scale1p_ref / shift_ref: (1, D) f32; o_ref: (TM, D)
    x = x_ref[...].astype(jnp.float32)
    mean = jnp.mean(x, axis=-1, keepdims=True)
    xc = x - mean
    var = jnp.mean(xc * xc, axis=-1, keepdims=True)
    xn = xc * jax.lax.rsqrt(var + eps)
    o_ref[...] = (xn * scale1p_ref[...] + shift_ref[...]).astype(o_ref.dtype)


def _round_up(n, m):
    return ((n + m - 1) // m) * m


@functools.partial(jax.jit, static_argnames=("eps", "tile_m"))
def ada_layer_norm(x, timestep, emb_table, linear_w_t, linear_b, *,
                   eps=1e-5, tile_m=512):
    """x: [..., dim]; timestep: scalar int; emb_table: [num_embeddings, dim];
    linear_w_t: [dim, 2*dim] (transpose of PyTorch weight); linear_b: [2*dim]."""
    dim = x.shape[-1]
    x2d = x.reshape(-1, dim)
    M = x2d.shape[0]

    # ---- stage 1: (1+scale, shift) from timestep (tiny) ---------------------
    ts = jnp.asarray(timestep, dtype=jnp.int32).reshape(())
    e_row = jax.lax.dynamic_slice_in_dim(emb_table, ts, 1, axis=0)  # (1, dim)
    b2d = linear_b.reshape(1, 2 * dim).astype(jnp.float32)          # hoisted cast

    scale1p, shift = pl.pallas_call(
        functools.partial(_scale_shift_kernel, dim=dim),
        out_shape=(jax.ShapeDtypeStruct((1, dim), jnp.float32),
                   jax.ShapeDtypeStruct((1, dim), jnp.float32)),
        grid=(1,),
        in_specs=[
            pl.BlockSpec((1, dim), lambda i: (0, 0)),
            pl.BlockSpec((dim, 2 * dim), lambda i: (0, 0)),
            pl.BlockSpec((1, 2 * dim), lambda i: (0, 0)),
        ],
        out_specs=[
            pl.BlockSpec((1, dim), lambda i: (0, 0)),
            pl.BlockSpec((1, dim), lambda i: (0, 0)),
        ],
        cost_estimate=pl.CostEstimate(
            flops=4 * dim * dim + 8 * dim,
            transcendentals=dim,
            bytes_accessed=4 * (dim + 2 * dim * dim + 6 * dim),
        ),
    )(e_row, linear_w_t, b2d)

    # ---- stage 2: LayerNorm + modulation over all rows (heavy) --------------
    # Large row tiles, clamped so (2x in + 2x out double buffers + f32 temps)
    # stays well inside the default VMEM window even for big dims.  The final
    # partial block is masked by Pallas on store; row-wise math means garbage
    # pad rows never leak into valid rows.
    bytes_per_row = dim * (4 * x.dtype.itemsize + 12)
    max_tm = max(8, ((8 * 1024 * 1024) // bytes_per_row) // 8 * 8)
    tm = min(tile_m, max_tm, _round_up(M, 8))
    grid_m = pl.cdiv(M, tm)

    out2d = pl.pallas_call(
        functools.partial(_ada_ln_kernel, eps=eps),
        out_shape=jax.ShapeDtypeStruct((M, dim), x.dtype),
        grid=(grid_m,),
        in_specs=[
            pl.BlockSpec((tm, dim), lambda i: (i, 0)),
            pl.BlockSpec((1, dim), lambda i: (0, 0)),   # resident across steps
            pl.BlockSpec((1, dim), lambda i: (0, 0)),   # resident across steps
        ],
        out_specs=pl.BlockSpec((tm, dim), lambda i: (i, 0)),
        compiler_params=pltpu.CompilerParams(
            dimension_semantics=("parallel",),
        ),
        cost_estimate=pl.CostEstimate(
            flops=9 * M * dim,
            transcendentals=M,
            bytes_accessed=2 * M * dim * x.dtype.itemsize + 8 * dim,
        ),
    )(x2d, scale1p, shift)

    # TODO(synk): for dim < 128 (as in this small test) the output stores are
    # lane-masked; real embedding_dim (multiple of 128) is already lane-dense.
    return out2d.reshape(x.shape)


def _reference(x, timestep, emb_table, linear_w_t, linear_b, eps=1e-5):
    dim = x.shape[-1]
    e = emb_table[timestep]
    h = e * jax.nn.sigmoid(e)
    emb = h @ linear_w_t + linear_b
    scale, shift = emb[:dim], emb[dim:]
    mean = x.mean(-1, keepdims=True)
    var = ((x - mean) ** 2).mean(-1, keepdims=True)
    xn = (x - mean) * jax.lax.rsqrt(var + eps)
    return xn * (1.0 + scale) + shift


if __name__ == "__main__":
    key = jax.random.PRNGKey(0)
    batch, seq, dim, num_embeddings = 2, 8, 32, 16

    kx, ke, kw, kb = jax.random.split(key, 4)
    x = jax.random.normal(kx, (batch, seq, dim), dtype=jnp.float32)
    emb_table = jax.random.normal(ke, (num_embeddings, dim), dtype=jnp.float32)
    # PyTorch Linear weight is [2*dim, dim]; we store its transpose [dim, 2*dim].
    bound = 1.0 / (dim ** 0.5)
    linear_w_t = jax.random.uniform(
        kw, (dim, 2 * dim), minval=-bound, maxval=bound, dtype=jnp.float32
    )
    linear_b = jax.random.uniform(
        kb, (2 * dim,), minval=-bound, maxval=bound, dtype=jnp.float32
    )
    timestep = jnp.array(3, dtype=jnp.int32)

    out = ada_layer_norm(x, timestep, emb_table, linear_w_t, linear_b)
    out = jax.block_until_ready(out)

    ref = _reference(x, timestep, emb_table, linear_w_t, linear_b)
    assert out.shape == x.shape
    assert jnp.allclose(out, ref, atol=1e-4, rtol=1e-4), "mismatch vs reference"

    print("KERNEL_OK")
</pallas_src>

<mosaic_0001>
module attributes {stable_mosaic.version = 11 : i64} {
  func.func @_ada_ln_kernel(%arg0: i32, %arg1: memref<16x32xf32, #tpu.memory_space<vmem>>, %arg2: memref<1x32xf32, #tpu.memory_space<vmem>>, %arg3: memref<1x32xf32, #tpu.memory_space<vmem>>, %arg4: memref<16x32xf32, #tpu.memory_space<vmem>>) attributes {dimension_semantics = [#tpu.dimension_semantics<parallel>], iteration_bounds = array<i64: 1>, scalar_prefetch = 0 : i64, scratch_operands = 0 : i64, tpu.core_type = #tpu.core_type<tc>, window_params = [{transform_indices = @transform_0, window_bounds = array<i64: 16, 32>}, {pipeline_mode = #tpu.pipeline_mode<synchronous>, transform_indices = @transform_1, window_bounds = array<i64: 1, 32>}, {pipeline_mode = #tpu.pipeline_mode<synchronous>, transform_indices = @transform_2, window_bounds = array<i64: 1, 32>}, {transform_indices = @transform_3, window_bounds = array<i64: 16, 32>}]} {
    %c0 = arith.constant 0 : index
    %c0_0 = arith.constant 0 : index
    %0 = vector.load %arg1[%c0, %c0_0] : memref<16x32xf32, #tpu.memory_space<vmem>>, vector<16x32xf32>
    %cst = arith.constant dense<0.000000e+00> : vector<16xf32>
    %1 = vector.multi_reduction <add>, %0, %cst [1] : vector<16x32xf32> to vector<16xf32>
    %2 = vector.shape_cast %1 : vector<16xf32> to vector<16x1xf32>
    %cst_1 = arith.constant 3.200000e+01 : f32
    %3 = vector.broadcast %cst_1 : f32 to vector<16x1xf32>
    %4 = arith.divf %2, %3 : vector<16x1xf32>
    %5 = vector.broadcast %4 : vector<16x1xf32> to vector<16x32xf32>
    %6 = arith.subf %0, %5 : vector<16x32xf32>
    %7 = arith.mulf %6, %6 : vector<16x32xf32>
    %cst_2 = arith.constant dense<0.000000e+00> : vector<16xf32>
    %8 = vector.multi_reduction <add>, %7, %cst_2 [1] : vector<16x32xf32> to vector<16xf32>
    %9 = vector.shape_cast %8 : vector<16xf32> to vector<16x1xf32>
    %cst_3 = arith.constant 3.200000e+01 : f32
    %10 = vector.broadcast %cst_3 : f32 to vector<16x1xf32>
    %11 = arith.divf %9, %10 : vector<16x1xf32>
    %cst_4 = arith.constant 9.99999974E-6 : f32
    %12 = vector.broadcast %cst_4 : f32 to vector<16x1xf32>
    %13 = arith.addf %11, %12 : vector<16x1xf32>
    %14 = math.rsqrt %13 : vector<16x1xf32>
    %15 = vector.broadcast %14 : vector<16x1xf32> to vector<16x32xf32>
    %16 = arith.mulf %6, %15 : vector<16x32xf32>
    %c0_5 = arith.constant 0 : index
    %c0_6 = arith.constant 0 : index
    %17 = vector.load %arg2[%c0_5, %c0_6] : memref<1x32xf32, #tpu.memory_space<vmem>>, vector<1x32xf32>
    %18 = vector.broadcast %17 : vector<1x32xf32> to vector<16x32xf32>
    %19 = arith.mulf %16, %18 : vector<16x32xf32>
    %c0_7 = arith.constant 0 : index
    %c0_8 = arith.constant 0 : index
    %20 = vector.load %arg3[%c0_7, %c0_8] : memref<1x32xf32, #tpu.memory_space<vmem>>, vector<1x32xf32>
    %21 = vector.broadcast %20 : vector<1x32xf32> to vector<16x32xf32>
    %22 = arith.addf %19, %21 : vector<16x32xf32>
    %c0_9 = arith.constant 0 : index
    %c0_10 = arith.constant 0 : index
    %23 = vector.load %arg4[%c0_9, %c0_10] : memref<16x32xf32, #tpu.memory_space<vmem>>, vector<16x32xf32>
    tpu.vector_store %arg4[%c0_9, %c0_10], %22 {strides = array<i32>} : memref<16x32xf32, #tpu.memory_space<vmem>>, vector<16x32xf32>,
    return
  }
  func.func @transform_0(%arg0: i32) -> (i32, i32) {
    %c0_i32 = arith.constant 0 : i32
    %c0_i32_0 = arith.constant 0 : i32
    return %arg0, %c0_i32 : i32, i32
  }
  func.func @transform_1(%arg0: i32) -> (i32, i32) {
    %c0_i32 = arith.constant 0 : i32
    %c0_i32_0 = arith.constant 0 : i32
    %c0_i32_1 = arith.constant 0 : i32
    return %c0_i32, %c0_i32_0 : i32, i32
  }
  func.func @transform_2(%arg0: i32) -> (i32, i32) {
    %c0_i32 = arith.constant 0 : i32
    %c0_i32_0 = arith.constant 0 : i32
    %c0_i32_1 = arith.constant 0 : i32
    return %c0_i32, %c0_i32_0 : i32, i32
  }
  func.func @transform_3(%arg0: i32) -> (i32, i32) {
    %c0_i32 = arith.constant 0 : i32
    %c0_i32_0 = arith.constant 0 : i32
    return %arg0, %c0_i32 : i32, i32
  }
}

module attributes {stable_mosaic.version = 11 : i64} {
  func.func @_scale_shift_kernel(%arg0: i32, %arg1: memref<1x32xf32, #tpu.memory_space<vmem>>, %arg2: memref<32x64xf32, #tpu.memory_space<vmem>>, %arg3: memref<1x64xf32, #tpu.memory_space<vmem>>, %arg4: memref<1x32xf32, #tpu.memory_space<vmem>>, %arg5: memref<1x32xf32, #tpu.memory_space<vmem>>) attributes {dimension_semantics = [#tpu.dimension_semantics<arbitrary>], iteration_bounds = array<i64: 1>, scalar_prefetch = 0 : i64, scratch_operands = 0 : i64, tpu.core_type = #tpu.core_type<tc>, window_params = [{pipeline_mode = #tpu.pipeline_mode<synchronous>, transform_indices = @transform_0, window_bounds = array<i64: 1, 32>}, {pipeline_mode = #tpu.pipeline_mode<synchronous>, transform_indices = @transform_1, window_bounds = array<i64: 32, 64>}, {pipeline_mode = #tpu.pipeline_mode<synchronous>, transform_indices = @transform_2, window_bounds = array<i64: 1, 64>}, {pipeline_mode = #tpu.pipeline_mode<synchronous>, transform_indices = @transform_3, window_bounds = array<i64: 1, 32>}, {pipeline_mode = #tpu.pipeline_mode<synchronous>, transform_indices = @transform_4, window_bounds = array<i64: 1, 32>}]} {
    %c0 = arith.constant 0 : index
    %c0_0 = arith.constant 0 : index
    %0 = vector.load %arg1[%c0, %c0_0] : memref<1x32xf32, #tpu.memory_space<vmem>>, vector<1x32xf32>
    %1 = arith.negf %0 : vector<1x32xf32>
    %2 = math.exp %1 : vector<1x32xf32>
    %cst = arith.constant 1.000000e+00 : f32
    %3 = vector.broadcast %cst : f32 to vector<1x32xf32>
    %4 = arith.addf %3, %2 : vector<1x32xf32>
    %5 = arith.divf %3, %4 : vector<1x32xf32>
    %6 = arith.mulf %0, %5 : vector<1x32xf32>
    %c0_1 = arith.constant 0 : index
    %c0_2 = arith.constant 0 : index
    %7 = vector.load %arg2[%c0_1, %c0_2] : memref<32x64xf32, #tpu.memory_space<vmem>>, vector<32x64xf32>
    %cst_3 = arith.constant dense<0.000000e+00> : vector<1x64xf32>
    %8 = tpu.matmul %6, %7, %cst_3 {dimension_numbers = #tpu.dot_dimension_numbers<[1], [0], [0], [1], [0, 0, 1, 1], [], []>} : vector<1x32xf32>, vector<32x64xf32>, vector<1x64xf32> -> vector<1x64xf32>
    %c0_4 = arith.constant 0 : index
    %c0_5 = arith.constant 0 : index
    %9 = vector.load %arg3[%c0_4, %c0_5] : memref<1x64xf32, #tpu.memory_space<vmem>>, vector<1x64xf32>
    %10 = arith.addf %8, %9 : vector<1x64xf32>
    %11 = vector.extract_strided_slice %10 {offsets = [0, 0], sizes = [1, 32], strides = [1, 1]} : vector<1x64xf32> to vector<1x32xf32>
    %cst_6 = arith.constant 1.000000e+00 : f32
    %12 = vector.broadcast %cst_6 : f32 to vector<1x32xf32>
    %13 = arith.addf %11, %12 : vector<1x32xf32>
    %c0_7 = arith.constant 0 : index
    %c0_8 = arith.constant 0 : index
    %14 = vector.load %arg4[%c0_7, %c0_8] : memref<1x32xf32, #tpu.memory_space<vmem>>, vector<1x32xf32>
    tpu.vector_store %arg4[%c0_7, %c0_8], %13 {strides = array<i32>} : memref<1x32xf32, #tpu.memory_space<vmem>>, vector<1x32xf32>,
    %15 = vector.extract_strided_slice %10 {offsets = [0, 32], sizes = [1, 32], strides = [1, 1]} : vector<1x64xf32> to vector<1x32xf32>
    %c0_9 = arith.constant 0 : index
    %c0_10 = arith.constant 0 : index
    %16 = vector.load %arg5[%c0_9, %c0_10] : memref<1x32xf32, #tpu.memory_space<vmem>>, vector<1x32xf32>
    tpu.vector_store %arg5[%c0_9, %c0_10], %15 {strides = array<i32>} : memref<1x32xf32, #tpu.memory_space<vmem>>, vector<1x32xf32>,
    return
  }
  func.func @transform_0(%arg0: i32) -> (i32, i32) {
    %c0_i32 = arith.constant 0 : i32
    %c0_i32_0 = arith.constant 0 : i32
    %c0_i32_1 = arith.constant 0 : i32
    return %c0_i32, %c0_i32_0 : i32, i32
  }
  func.func @transform_1(%arg0: i32) -> (i32, i32) {
    %c0_i32 = arith.constant 0 : i32
    %c0_i32_0 = arith.constant 0 : i32
    %c0_i32_1 = arith.constant 0 : i32
    return %c0_i32, %c0_i32_0 : i32, i32
  }
  func.func @transform_2(%arg0: i32) -> (i32, i32) {
    %c0_i32 = arith.constant 0 : i32
    %c0_i32_0 = arith.constant 0 : i32
    %c0_i32_1 = arith.constant 0 : i32
    return %c0_i32, %c0_i32_0 : i32, i32
  }
  func.func @transform_3(%arg0: i32) -> (i32, i32) {
    %c0_i32 = arith.constant 0 : i32
    %c0_i32_0 = arith.constant 0 : i32
    %c0_i32_1 = arith.constant 0 : i32
    return %c0_i32, %c0_i32_0 : i32, i32
  }
  func.func @transform_4(%arg0: i32) -> (i32, i32) {
    %c0_i32 = arith.constant 0 : i32
    %c0_i32_0 = arith.constant 0 : i32
    %c0_i32_1 = arith.constant 0 : i32
    return %c0_i32, %c0_i32_0 : i32, i32
  }
}

</mosaic_0001>

<llo_original>
// kernel: ada_layer_norm.3
$region0: #{ada_layer_norm.3}
  #allocation0 [shape = 'u32[]', space=smem, size = 0x4, offset = 0x4, fixed_abs, tag = 'smem constant byte address 0x4 - core index']
  #allocation1 [shape = 'u32[144,128]{1,0:T(1,128)}', space=vmem, size = 0x12000, scoped, tag = 'internal scratch']
  %s0 = inlined_call_operand.vmem [shape: f32[16,32], index: 0, kind: input, shape index: {}]
  %s1 = inlined_call_operand.vmem [shape: f32[1,32], index: 1, kind: input, shape index: {}]
  %s2 = inlined_call_operand.vmem [shape: f32[1,32], index: 2, kind: input, shape index: {}]
  %s3 = inlined_call_operand.hbm [shape: f32[16,32], index: 3, kind: output, shape index: {}]
  %s4 = sld [smem:[#allocation0]]
  $region22: #{ada_layer_norm.3} parent=0
    _
  %s6 = ssub.s32 1, %s4
  %s7 = scalar_select 0, %s6, %s4
  $region1: #{ada_layer_norm.3} parent=0
    #allocation2 [shape = 'u8[8192]{0}', space=vmem, size = 0x2000, scoped, tag = 'output window, operand 0, single buffered']
    #allocation3 [shape = 's32[1]{0}', space=sflag, size = 0x4, scoped, tag = 'scoped memory for ada_layer_norm.3']
    %8 = vsyncpa [#allocation3], 0
    // Predicated region
    $region2: #{ada_layer_norm.3} parent=1 // pred_check
      _
    $region3: #{ada_layer_norm.3} parent=1 // pred_check_branch
      %10 = sbr.rel (0) target = $region5
    $region4: #{ada_layer_norm.3} parent=1 // pred_region
      _
    $region5: #{ada_layer_norm.3} parent=1 // pred_fallthru
      _
    // Predicated region
    $region6: #{ada_layer_norm.3} parent=1 // pred_check
      _
    $region7: #{ada_layer_norm.3} parent=1 // pred_check_branch
      %12 = sbr.rel (0) target = $region9
    $region8: #{ada_layer_norm.3} parent=1 // pred_region
      _
    $region9: #{ada_layer_norm.3} parent=1 // pred_fallthru
      _
    // Predicated region
    $region10: #{ada_layer_norm.3} parent=1 // pred_check
      _
    $region11: #{ada_layer_norm.3} parent=1 // pred_check_branch
      %14 = sbr.rel (0) target = $region13
    $region12: #{ada_layer_norm.3} parent=1 // pred_region
      _
    $region13: #{ada_layer_norm.3} parent=1 // pred_fallthru
      _
    %v15 = vld [vmem:[%s0] sm:$0xff]
    %v16 = vld [vmem:[%s0 + $0x8] sm:$0xff]
    %vm17 = vcmask 261120
    %v18 = vsel %vm17, %v15, 0.0
    %19 = vadd.xlane.f32.xlu0 %v18
    %v20 = vpop.xlane.xlu0 %19
    %v21 = vsel %vm17, %v16, 0.0
    %22 = vadd.xlane.f32.xlu0 %v21
    %v23 = vpop.xlane.xlu0 %22
    %v24 = vrcp.pop 32.0
    %v25 = vmul.f32 %v20, %v24
    %v26 = vmul.f32 %v23, %v24
    %v27 = vsub.f32 %v15, %v25
    %v28 = vsub.f32 %v16, %v26
    %v29 = vmul.f32 %v27, %v27
    %v30 = vmul.f32 %v28, %v28
    %v31 = vsel %vm17, %v29, 0.0
    %32 = vadd.xlane.f32.xlu0 %v31
    %v33 = vpop.xlane.xlu0 %32
    %v34 = vsel %vm17, %v30, 0.0
    %35 = vadd.xlane.f32.xlu0 %v34
    %v36 = vpop.xlane.xlu0 %35
    %v37 = vmul.f32 %v33, %v24
    %v38 = vmul.f32 %v36, %v24
    %v39 = vadd.f32 %v37, 1e-05
    %v40 = vadd.f32 %v38, 1e-05
    %v41 = vrsqrt.pop %v39
    %v42 = vrsqrt.pop %v40
    %v43 = vmul.f32 %v27, %v41
    %v44 = vmul.f32 %v28, %v42
    %v45 = vld [vmem:[%s1] sm:$0x1]
    %v47 = vlaneseq
    %v48 = vshrl.u32 %v47, 7
    %v49 = vsub.s32 0, %v48
    %v50 = vrot.slane %v45, %v49
    %v52 = vmul.f32 %v43, %v50
    %v53 = vmul.f32 %v44, %v50
    %v54 = vld [vmem:[%s2] sm:$0x1]
    %v56 = vlaneseq
    %v57 = vshrl.u32 %v56, 7
    %v58 = vsub.s32 0, %v57
    %v59 = vrot.slane %v54, %v58
    %v61 = vadd.f32 %v52, %v59
    %v62 = vadd.f32 %v53, %v59
    %63 = vst.msk [vmem:[#allocation2] sm:$0xff] %vm17, %v61
    %64 = vst.msk [vmem:[#allocation2 + $0x8] sm:$0xff] %vm17, %v62
    // Predicated region
    $region14: #{ada_layer_norm.3} parent=1 // pred_check
      _
    $region15: #{ada_layer_norm.3} parent=1 // pred_check_branch
      %66 = sbr.rel (0) target = $region17
    $region16: #{ada_layer_norm.3} parent=1 // pred_region
      %s68 = ssub.s32 256, 256
      %69 = vsyncadd [#allocation3], %s68
      %s70 = sshll.u32 [#allocation2], 4
      %s71 = int_to_ptr.vmem [resolvable:$true] %s70
      %76 = dma.vmem_to_hbm [thread:$0]  %s71, 256, %s3, [#allocation3], 128, 128, 8
    $region17: #{ada_layer_norm.3} parent=1 // pred_fallthru
      _
    // Predicated region
    $region18: #{ada_layer_norm.3} parent=1 // pred_check
      _
    $region19: #{ada_layer_norm.3} parent=1 // pred_check_branch
      %78 = sbr.rel (0) target = $region21
    $region20: #{ada_layer_norm.3} parent=1 // pred_region
      %79 = dma.done [#allocation3], 256
    $region21: #{ada_layer_norm.3} parent=1 // pred_fallthru
      _
    %80 = vsyncpa [#allocation3], 1

// kernel: ada_layer_norm.2
$region0: #{ada_layer_norm.2}
  #allocation0 [shape = 'u32[]', space=smem, size = 0x4, offset = 0x4, fixed_abs, tag = 'smem constant byte address 0x4 - core index']
  #allocation1 [shape = 'u32[144,128]{1,0:T(1,128)}', space=vmem, size = 0x12000, scoped, tag = 'internal scratch']
  %s0 = inlined_call_operand.vmem [shape: f32[1,32], index: 0, kind: input, shape index: {}]
  %s1 = inlined_call_operand.vmem [shape: f32[32,64], index: 1, kind: input, shape index: {}]
  %s2 = inlined_call_operand.vmem [shape: f32[1,64], index: 2, kind: input, shape index: {}]
  %s3 = inlined_call_operand.vmem [shape: f32[1,32], index: 3, kind: output, shape index: {0}]
  %s4 = inlined_call_operand.vmem [shape: f32[1,32], index: 4, kind: output, shape index: {1}]
  %5 = xla_tuple %s3, %s4
  %s6 = sld [smem:[#allocation0]]
  $region30: #{ada_layer_norm.2} parent=0
    _
  %s8 = ssub.s32 1, %s6
  %s9 = scalar_select 0, %s8, %s6
  // Predicated region
  $region2: #{ada_layer_norm.2} parent=0 // pred_check
    _
  $region3: #{ada_layer_norm.2} parent=0 // pred_check_branch
    %11 = sbr.rel (0) target = $region5
  $region4: #{ada_layer_norm.2} parent=0 // pred_region
    _
  $region5: #{ada_layer_norm.2} parent=0 // pred_fallthru
    _
  // Predicated region
  $region6: #{ada_layer_norm.2} parent=0 // pred_check
    _
  $region7: #{ada_layer_norm.2} parent=0 // pred_check_branch
    %13 = sbr.rel (0) target = $region9
  $region8: #{ada_layer_norm.2} parent=0 // pred_region
    _
  $region9: #{ada_layer_norm.2} parent=0 // pred_fallthru
    _
  // Predicated region
  $region10: #{ada_layer_norm.2} parent=0 // pred_check
    _
  $region11: #{ada_layer_norm.2} parent=0 // pred_check_branch
    %15 = sbr.rel (0) target = $region13
  $region12: #{ada_layer_norm.2} parent=0 // pred_region
    _
  $region13: #{ada_layer_norm.2} parent=0 // pred_fallthru
    _
  %v16 = vld [vmem:[%s0] sm:$0x1]
  %v17 = vxor.u32 %v16, 2147483648
  %v18 = vmul.f32 %v17, 1.442695
  %v19 = vpow.pop %v18
  %v20 = vadd.f32 %v19, 1.0
  %v21 = vrcp.pop %v20
  %v22 = vmul.f32 1.0, %v21
  %v23 = vmul.f32 %v16, %v22
  %v24 = vld [vmem:[%s1] sm:$0xff]
  %v25 = vld [vmem:[%s1 + $0x8] sm:$0xff]
  %v26 = vld [vmem:[%s1 + $0x10] sm:$0xff]
  %v27 = vld [vmem:[%s1 + $0x18] sm:$0xff]
  %v28 = vld [vmem:[%s2] sm:$0x1]
  %vm29 = vcmask 261120
  %v31 = vsel %vm29, %v23, 0
  %33 = vmatprep.subr.mxu0 0.0
  %34 = vmatpush1.msra.mxu0 %v24
  %35 = vmatprep.subr.mxu0 0.0
  %36 = vmatpush1.msra.mxu0 %v25
  %37 = vmatprep.subr.mxu0 0.0
  %38 = vmatpush1.msra.mxu0 %v26
  %39 = vmatprep.subr.mxu0 0.0
  %40 = vmatpush1.msra.mxu0 %v27
  %41 = vmatprep.subr.mxu0 0.0
  %42 = vmatpush1.msra.mxu0 0.0
  %43 = vmatprep.subr.mxu0 0.0
  %44 = vmatpush1.msra.mxu0 0.0
  %45 = vmatprep.subr.mxu0 0.0
  %46 = vmatpush1.msra.mxu0 0.0
  %47 = vmatprep.subr.mxu0 0.0
  %48 = vmatpush1.msra.mxu0 0.0
  %49 = vmatprep.subr.mxu0 0.0
  %50 = vmatpush1.msra.mxu0 0.0
  %51 = vmatprep.subr.mxu0 0.0
  %52 = vmatpush1.msra.mxu0 0.0
  %53 = vmatprep.subr.mxu0 0.0
  %54 = vmatpush1.msra.mxu0 0.0
  %55 = vmatprep.subr.mxu0 0.0
  %56 = vmatpush1.msra.mxu0 0.0
  %57 = vmatprep.subr.mxu0 0.0
  %58 = vmatpush1.msra.mxu0 0.0
  %59 = vmatprep.subr.mxu0 0.0
  %60 = vmatpush1.msra.mxu0 0.0
  %61 = vmatprep.subr.mxu0 0.0
  %62 = vmatpush1.msra.mxu0 0.0
  %63 = vmatprep.subr.mxu0 0.0
  %64 = vmatpush1.msra.mxu0 0.0
  %65 = vmatprep.subr.mxu0 0.0
  %66 = vmatpush1.msra.mxu0 0.0
  %67 = vmatprep.subr.mxu0 0.0
  %68 = vmatpush1.msra.mxu0 0.0
  %69 = vmatprep.subr.mxu0 0.0
  %70 = vmatpush1.msra.mxu0 0.0
  %71 = vmatprep.subr.mxu0 0.0
  %72 = vmatpush1.msra.mxu0 0.0
  %73 = vmatprep.subr.mxu0 0.0
  %74 = vmatpush1.msra.mxu0 0.0
  %75 = vmatprep.subr.mxu0 0.0
  %76 = vmatpush1.msra.mxu0 0.0
  %77 = vmatprep.subr.mxu0 0.0
  %78 = vmatpush1.msra.mxu0 0.0
  %79 = vmatprep.subr.mxu0 0.0
  %80 = vmatpush1.msra.mxu0 0.0
  %81 = vmatprep.subr.mxu0 0.0
  %82 = vmatpush1.msra.mxu0 0.0
  %83 = vmatprep.subr.mxu0 0.0
  %84 = vmatpush1.msra.mxu0 0.0
  %85 = vmatprep.subr.mxu0 0.0
  %86 = vmatpush1.msra.mxu0 0.0
  %87 = vmatprep.subr.mxu0 0.0
  %88 = vmatpush1.msra.mxu0 0.0
  %89 = vmatprep.subr.mxu0 0.0
  %90 = vmatpush1.msra.mxu0 0.0
  %91 = vmatprep.subr.mxu0 0.0
  %92 = vmatpush1.msra.mxu0 0.0
  %93 = vmatprep.subr.mxu0 0.0
  %94 = vmatpush1.msra.mxu0 0.0
  %95 = vmatprep.subr.mxu0 0.0
  %96 = vmatpush1.msra.mxu0 0.0
  %97 = vmatprep.mubr.f32.mxu0 0.0
  %98 = vmatmul.mubr.f32.gmra.mrb[0].mxu0 %v31
  %v99 = vpop.f32.mrb[0].mxu0
  %v100 = vadd.f32 %v28, %v99
  %v101 = vpop.f32.mrb[0].mxu0
  %102 = vdwg.mxu0
  %v103 = vadd.f32 %v100, 1.0
  %vm104 = vcmask 253952
  %105 = vst.msk [vmem:[%s3] sm:$0x1] %vm104, %v103
  %107 = vrot.lane.b32.xlu0 %v100, 96
  %v108 = vpop.permute.xlu0 %107
  %110 = vst.msk [vmem:[%s4] sm:$0x1] %vm104, %v108
  // Predicated region
  $region14: #{ada_layer_norm.2} parent=0 // pred_check
    _
  $region15: #{ada_layer_norm.2} parent=0 // pred_check_branch
    %112 = sbr.rel (0) target = $region17
  $region16: #{ada_layer_norm.2} parent=0 // pred_region
    _
  $region17: #{ada_layer_norm.2} parent=0 // pred_fallthru
    _
  // Predicated region
  $region18: #{ada_layer_norm.2} parent=0 // pred_check
    _
  $region19: #{ada_layer_norm.2} parent=0 // pred_check_branch
    %114 = sbr.rel (0) target = $region21
  $region20: #{ada_layer_norm.2} parent=0 // pred_region
    _
  $region21: #{ada_layer_norm.2} parent=0 // pred_fallthru
    _
  // Predicated region
  $region22: #{ada_layer_norm.2} parent=0 // pred_check
    _
  $region23: #{ada_layer_norm.2} parent=0 // pred_check_branch
    %116 = sbr.rel (0) target = $region25
  $region24: #{ada_layer_norm.2} parent=0 // pred_region
    _
  $region25: #{ada_layer_norm.2} parent=0 // pred_fallthru
    _
  // Predicated region
  $region26: #{ada_layer_norm.2} parent=0 // pred_check
    _
  $region27: #{ada_layer_norm.2} parent=0 // pred_check_branch
    %118 = sbr.rel (0) target = $region29
  $region28: #{ada_layer_norm.2} parent=0 // pred_region
    _
  $region29: #{ada_layer_norm.2} parent=0 // pred_fallthru
    _

</llo_original>
